<compile_context>
chip_gen: v5e
topology: v5e:2x2
jax: 0.10.0
libtpu: 0.0.40
codegen_flags: <defaults>
</compile_context>

<pallas_src>
import jax
import jax.numpy as jnp
from jax.scipy.linalg import block_diag
from jax.experimental import pallas as pl
from jax.experimental.pallas import tpu as pltpu

DIM_L = 32      # l_hidden_dim
DIM_M = 32      # m_hidden_dim
K = 8
MAX_LEN = 1     # see shape note above
BATCH = 2

D2 = DIM_L + DIM_M          # 64   packed feature width
GW = K * D2                 # 512  width of the bilinear / replication blocks
BIAS_ROW = GW + D2          # 576  row of b_fc inside slab_b


def _cross_share_kernel(lh_ref, mh_ref, wa_ref, wb_ref, out_ref):
    f32 = jnp.float32
    lh = lh_ref[...]                                   # [TB, 32]
    mh = mh_ref[...]                                   # [TB, 32]
    x = jnp.concatenate([lh, mh], axis=-1)             # [TB, 64] = [lh | mh]

    # one MXU push does: bilinear forms, opposite-activation replication, and
    # the (folded) fc1->fc2 affine path.
    big = jnp.dot(x, wa_ref[...], preferred_element_type=f32)   # [TB, 1088]
    t = big[:, :GW]                                    # lh@G_l_m | mh@G_m_l
    y = big[:, GW:2 * GW]                              # [mh x K | lh x K]
    g = big[:, 2 * GW:] + wb_ref[BIAS_ROW:BIAS_ROW + 1, :]       # [G_vec_l|G_vec_m]

    # per-(direction, k) bilinear scalars via a 0/1 selector matmul, tanh,
    # then the per-k sum + lane broadcast as one more tiny matmul.
    s = jnp.tanh(jnp.dot(t * y, wb_ref[:GW, :],
                         preferred_element_type=f32))            # [TB, 64] (16 live)
    sc = jnp.dot(s, wb_ref[GW:GW + D2, :],
                 preferred_element_type=f32)                     # [scale_l*1 | scale_m*1]
    vec = sc * g                                                 # [l_vector | m_vector]

    def _softmax(v):
        v = v - jnp.max(v, axis=-1, keepdims=True)
        e = jnp.exp(v)
        return e * pl.reciprocal(jnp.sum(e, axis=-1, keepdims=True), approx=False)

    att = jnp.concatenate([_softmax(vec[:, :DIM_L]),
                           _softmax(vec[:, DIM_L:])], axis=-1)   # [TB, 64]

    # lane-dense 128-wide packed store: [l_out | m_out | l_att | m_att]
    out_ref[...] = jnp.concatenate([x * (1.0 + att), att], axis=-1)


def prepare_cross_share_params(params):
    """One-time packing of module parameters into two lane-dense slabs."""
    f32 = jnp.float32
    wl1, wl2 = params["wl1"].astype(f32), params["wl2"].astype(f32)
    wm1, wm2 = params["wm1"].astype(f32), params["wm2"].astype(f32)
    bl1, bl2 = params["bl1"].astype(f32), params["bl2"].astype(f32)
    bm1, bm2 = params["bm1"].astype(f32), params["bm2"].astype(f32)

    # eval-mode dropout == identity -> fc2(fc1(.)) is a single affine map.
    w_fc = block_diag(wl1 @ wl2, wm1 @ wm2)                               # [64, 64]
    b_fc = jnp.concatenate([bl1 @ wl2 + bl2, bm1 @ wm2 + bm2], axis=1)    # [1, 64]

    # bilinear tensors in the torch reshape layout, block-diagonal.
    glm = params["G_l_m"].reshape(DIM_L, K * DIM_M).astype(f32)
    gml = params["G_m_l"].reshape(DIM_M, K * DIM_L).astype(f32)
    g_blk = block_diag(glm, gml)                                          # [64, 512]

    # replication matrix: [lh | mh] @ R == [mh tiled K | lh tiled K].
    t_l = jnp.tile(jnp.eye(DIM_L, dtype=f32), (1, K))                     # [32, K*32]
    t_m = jnp.tile(jnp.eye(DIM_M, dtype=f32), (1, K))                     # [32, K*32]
    r = jnp.zeros((D2, GW), f32)
    r = r.at[DIM_L:, :K * DIM_M].set(t_m)     # mh rows -> first K*dim_m columns
    r = r.at[:DIM_L, K * DIM_M:].set(t_l)     # lh rows -> last  K*dim_l columns

    slab_a = jnp.concatenate([g_blk, r, w_fc], axis=1)                    # [64, 1088]

    # 0/1 selector: grouped 32-lane sums -> per-(direction, k) scalars.
    sel_l = jnp.kron(jnp.eye(K, dtype=f32), jnp.ones((DIM_M, 1), f32))    # [256, 8]
    sel_m = jnp.kron(jnp.eye(K, dtype=f32), jnp.ones((DIM_L, 1), f32))    # [256, 8]
    sel = block_diag(sel_l, sel_m)                                        # [512, 16]
    sel_pad = jnp.pad(sel, ((0, 0), (0, D2 - 2 * K)))                     # [512, 64]

    # per-k sum + lane broadcast of scale_l / scale_m in one matmul.
    m_bcast = block_diag(jnp.ones((K, DIM_L), f32), jnp.ones((K, DIM_M), f32))
    m_pad = jnp.pad(m_bcast, ((0, D2 - 2 * K), (0, 0)))                   # [64, 64]

    slab_b = jnp.concatenate([sel_pad, m_pad, b_fc], axis=0)              # [577, 64]
    return {"slab_a": slab_a, "slab_b": slab_b}


def cross_share_unit(l_hidden, m_hidden, prep, row_block=512):
    """l_hidden: [B, max_len, dim_l], m_hidden: [B, max_len, dim_m]."""
    B, M, _ = l_hidden.shape
    assert M == MAX_LEN == 1, "module algebra only consistent for max_len == 1"

    lh = l_hidden.reshape(B, DIM_L).astype(jnp.float32)
    mh = m_hidden.reshape(B, DIM_M).astype(jnp.float32)
    slab_a, slab_b = prep["slab_a"], prep["slab_b"]

    # Row-tiled "parallel" grid for large batched calls (v7x 2 TCs); single
    # full-array block for small B such as the B=2 demo.
    tb = row_block if (B >= row_block and B % row_block == 0) else B
    grid = (B // tb,)
    out_w = 2 * D2

    cost = pl.CostEstimate(
        flops=2 * B * (D2 * slab_a.shape[1] + GW * D2 + D2 * D2),
        transcendentals=B * 2 * D2,
        bytes_accessed=4 * (slab_a.size + slab_b.size + B * (D2 + out_w)),
    )

    packed = pl.pallas_call(
        _cross_share_kernel,
        out_shape=jax.ShapeDtypeStruct((B, out_w), jnp.float32),
        grid=grid,
        in_specs=[
            pl.BlockSpec((tb, DIM_L), lambda i: (i, 0)),
            pl.BlockSpec((tb, DIM_M), lambda i: (i, 0)),
            pl.BlockSpec(slab_a.shape, lambda i: (0, 0)),
            pl.BlockSpec(slab_b.shape, lambda i: (0, 0)),
        ],
        out_specs=pl.BlockSpec((tb, out_w), lambda i: (i, 0)),
        compiler_params=pltpu.CompilerParams(dimension_semantics=("parallel",)),
        cost_estimate=cost,
    )(lh, mh, slab_a, slab_b)

    l_out = packed[:, :DIM_L].reshape(B, MAX_LEN, DIM_L)
    m_out = packed[:, DIM_L:D2].reshape(B, MAX_LEN, DIM_M)
    l_att = packed[:, D2:D2 + DIM_L].reshape(B, MAX_LEN * MAX_LEN, DIM_L)
    m_att = packed[:, D2 + DIM_L:].reshape(B, MAX_LEN * MAX_LEN, DIM_M)
    return l_out, m_out, l_att, m_att


def torch_style_reference(l_hidden, m_hidden, p):
    """Literal jnp translation of the PyTorch forward (max_len == 1, eval)."""
    B, M, _ = l_hidden.shape
    G_vec_l = jnp.matmul(l_hidden, p["wl1"]) + p["bl1"]
    G_vec_l = jnp.matmul(G_vec_l, p["wl2"]) + p["bl2"]
    G_vec_m = jnp.matmul(m_hidden, p["wm1"]) + p["bm1"]
    G_vec_m = jnp.matmul(G_vec_m, p["wm2"]) + p["bm2"]

    def branch(x_hidden, y_hidden, G, G_vec, dim_out):
        G2 = jnp.broadcast_to(G.reshape(G.shape[0], -1), (B, G.shape[0], K * dim_out))
        shared = jnp.matmul(x_hidden, G2)                       # [B, M, K*dim_out]
        shared = shared.reshape(B, M * K, dim_out)
        shared = jnp.tanh(jnp.matmul(shared, jnp.transpose(y_hidden, (0, 2, 1))))
        shared = shared.reshape(B, M, K, M).transpose(0, 1, 3, 2).reshape(B, M * M, K)
        G_vec_rep = jnp.tile(G_vec, (1, K, 1))                  # [B, K*M, dim]
        shared = jnp.matmul(shared, G_vec_rep)                  # [B, M*M, dim]
        return shared

    l_vector = branch(l_hidden, m_hidden, p["G_l_m"], G_vec_l, DIM_M)
    m_vector = branch(m_hidden, l_hidden, p["G_m_l"], G_vec_m, DIM_L)
    l_att = jax.nn.softmax(l_vector, axis=-1)
    m_att = jax.nn.softmax(m_vector, axis=-1)
    l_out = l_hidden + l_att * l_hidden
    m_out = m_hidden + m_att * m_hidden
    return l_out, m_out, l_att, m_att


if __name__ == "__main__":
    key = jax.random.PRNGKey(0)
    ks = jax.random.split(key, 12)

    l_hidden = jax.random.normal(ks[0], (BATCH, MAX_LEN, DIM_L), jnp.float32)
    m_hidden = jax.random.normal(ks[1], (BATCH, MAX_LEN, DIM_M), jnp.float32)

    params = {
        "wl1": 0.1 * jax.random.normal(ks[2], (DIM_L, 256), jnp.float32),
        "bl1": 0.1 * jax.random.normal(ks[3], (1, 256), jnp.float32),
        "wl2": 0.1 * jax.random.normal(ks[4], (256, DIM_L), jnp.float32),
        "bl2": 0.1 * jax.random.normal(ks[5], (1, DIM_L), jnp.float32),
        "wm1": 0.1 * jax.random.normal(ks[6], (DIM_M, 128), jnp.float32),
        "bm1": 0.1 * jax.random.normal(ks[7], (1, 128), jnp.float32),
        "wm2": 0.1 * jax.random.normal(ks[8], (128, DIM_M), jnp.float32),
        "bm2": 0.1 * jax.random.normal(ks[9], (1, DIM_M), jnp.float32),
        # torch.randn(...) tensors, generated deterministically here:
        "G_l_m": jax.random.normal(ks[10], (DIM_L, K, DIM_M), jnp.float32),
        "G_m_l": jax.random.normal(ks[11], (DIM_M, K, DIM_L), jnp.float32),
    }

    # One-time parameter preparation (not per forward call).
    prep = jax.block_until_ready(prepare_cross_share_params(params))

    outs = cross_share_unit(l_hidden, m_hidden, prep)
    outs = jax.block_until_ready(outs)

    refs = torch_style_reference(l_hidden, m_hidden, params)
    for o, r in zip(outs, refs):
        assert o.shape == r.shape, (o.shape, r.shape)
        assert jnp.allclose(o, r, atol=1e-2, rtol=1e-2), float(jnp.max(jnp.abs(o - r)))

    print("KERNEL_OK")
</pallas_src>

<mosaic_0001>
module attributes {stable_mosaic.version = 11 : i64} {
  func.func @_cross_share_kernel(%arg0: i32, %arg1: memref<2x32xf32, #tpu.memory_space<vmem>>, %arg2: memref<2x32xf32, #tpu.memory_space<vmem>>, %arg3: memref<64x1088xf32, #tpu.memory_space<vmem>>, %arg4: memref<577x64xf32, #tpu.memory_space<vmem>>, %arg5: memref<2x128xf32, #tpu.memory_space<vmem>>) attributes {dimension_semantics = [#tpu.dimension_semantics<parallel>], iteration_bounds = array<i64: 1>, scalar_prefetch = 0 : i64, scratch_operands = 0 : i64, tpu.core_type = #tpu.core_type<tc>, window_params = [{transform_indices = @transform_0, window_bounds = array<i64: 2, 32>}, {transform_indices = @transform_1, window_bounds = array<i64: 2, 32>}, {pipeline_mode = #tpu.pipeline_mode<synchronous>, transform_indices = @transform_2, window_bounds = array<i64: 64, 1088>}, {pipeline_mode = #tpu.pipeline_mode<synchronous>, transform_indices = @transform_3, window_bounds = array<i64: 577, 64>}, {transform_indices = @transform_4, window_bounds = array<i64: 2, 128>}]} {
    %c0 = arith.constant 0 : index
    %c0_0 = arith.constant 0 : index
    %0 = vector.load %arg1[%c0, %c0_0] : memref<2x32xf32, #tpu.memory_space<vmem>>, vector<2x32xf32>
    %c0_1 = arith.constant 0 : index
    %c0_2 = arith.constant 0 : index
    %1 = vector.load %arg2[%c0_1, %c0_2] : memref<2x32xf32, #tpu.memory_space<vmem>>, vector<2x32xf32>
    %2 = tpu.concatenate %0, %1 in 1 : vector<2x32xf32>, vector<2x32xf32> -> vector<2x64xf32>
    %c0_3 = arith.constant 0 : index
    %c0_4 = arith.constant 0 : index
    %3 = vector.load %arg3[%c0_3, %c0_4] : memref<64x1088xf32, #tpu.memory_space<vmem>>, vector<64x1088xf32>
    %cst = arith.constant dense<0.000000e+00> : vector<2x1088xf32>
    %4 = tpu.matmul %2, %3, %cst {dimension_numbers = #tpu.dot_dimension_numbers<[1], [0], [0], [1], [0, 0, 1, 1], [], []>} : vector<2x64xf32>, vector<64x1088xf32>, vector<2x1088xf32> -> vector<2x1088xf32>
    %5 = vector.extract_strided_slice %4 {offsets = [0, 0], sizes = [2, 512], strides = [1, 1]} : vector<2x1088xf32> to vector<2x512xf32>
    %6 = vector.extract_strided_slice %4 {offsets = [0, 512], sizes = [2, 512], strides = [1, 1]} : vector<2x1088xf32> to vector<2x512xf32>
    %7 = vector.extract_strided_slice %4 {offsets = [0, 1024], sizes = [2, 64], strides = [1, 1]} : vector<2x1088xf32> to vector<2x64xf32>
    %c576 = arith.constant 576 : index
    %c0_5 = arith.constant 0 : index
    %8 = vector.load %arg4[%c576, %c0_5] : memref<577x64xf32, #tpu.memory_space<vmem>>, vector<1x64xf32>
    %9 = vector.broadcast %8 : vector<1x64xf32> to vector<2x64xf32>
    %10 = arith.addf %7, %9 : vector<2x64xf32>
    %11 = arith.mulf %5, %6 : vector<2x512xf32>
    %c0_6 = arith.constant 0 : index
    %c0_7 = arith.constant 0 : index
    %12 = vector.load %arg4[%c0_6, %c0_7] : memref<577x64xf32, #tpu.memory_space<vmem>>, vector<512x64xf32>
    %cst_8 = arith.constant dense<0.000000e+00> : vector<2x64xf32>
    %13 = tpu.matmul %11, %12, %cst_8 {dimension_numbers = #tpu.dot_dimension_numbers<[1], [0], [0], [1], [0, 0, 1, 1], [], []>} : vector<2x512xf32>, vector<512x64xf32>, vector<2x64xf32> -> vector<2x64xf32>
    %14 = math.tanh %13 : vector<2x64xf32>
    %c512 = arith.constant 512 : index
    %c0_9 = arith.constant 0 : index
    %15 = vector.load %arg4[%c512, %c0_9] : memref<577x64xf32, #tpu.memory_space<vmem>>, vector<64x64xf32>
    %cst_10 = arith.constant dense<0.000000e+00> : vector<2x64xf32>
    %16 = tpu.matmul %14, %15, %cst_10 {dimension_numbers = #tpu.dot_dimension_numbers<[1], [0], [0], [1], [0, 0, 1, 1], [], []>} : vector<2x64xf32>, vector<64x64xf32>, vector<2x64xf32> -> vector<2x64xf32>
    %17 = arith.mulf %16, %10 : vector<2x64xf32>
    %18 = vector.extract_strided_slice %17 {offsets = [0, 0], sizes = [2, 32], strides = [1, 1]} : vector<2x64xf32> to vector<2x32xf32>
    %cst_11 = arith.constant dense<0xFF800000> : vector<2xf32>
    %19 = vector.multi_reduction <maximumf>, %18, %cst_11 [1] : vector<2x32xf32> to vector<2xf32>
    %20 = vector.shape_cast %19 : vector<2xf32> to vector<2x1xf32>
    %21 = vector.broadcast %20 : vector<2x1xf32> to vector<2x32xf32>
    %22 = arith.subf %18, %21 : vector<2x32xf32>
    %23 = math.exp %22 : vector<2x32xf32>
    %cst_12 = arith.constant dense<0.000000e+00> : vector<2xf32>
    %24 = vector.multi_reduction <add>, %23, %cst_12 [1] : vector<2x32xf32> to vector<2xf32>
    %25 = vector.shape_cast %24 : vector<2xf32> to vector<2x1xf32>
    %26 = tpu.reciprocal %25 : vector<2x1xf32> -> vector<2x1xf32>
    %27 = vector.broadcast %26 : vector<2x1xf32> to vector<2x32xf32>
    %28 = arith.mulf %23, %27 : vector<2x32xf32>
    %29 = vector.extract_strided_slice %17 {offsets = [0, 32], sizes = [2, 32], strides = [1, 1]} : vector<2x64xf32> to vector<2x32xf32>
    %cst_13 = arith.constant dense<0xFF800000> : vector<2xf32>
    %30 = vector.multi_reduction <maximumf>, %29, %cst_13 [1] : vector<2x32xf32> to vector<2xf32>
    %31 = vector.shape_cast %30 : vector<2xf32> to vector<2x1xf32>
    %32 = vector.broadcast %31 : vector<2x1xf32> to vector<2x32xf32>
    %33 = arith.subf %29, %32 : vector<2x32xf32>
    %34 = math.exp %33 : vector<2x32xf32>
    %cst_14 = arith.constant dense<0.000000e+00> : vector<2xf32>
    %35 = vector.multi_reduction <add>, %34, %cst_14 [1] : vector<2x32xf32> to vector<2xf32>
    %36 = vector.shape_cast %35 : vector<2xf32> to vector<2x1xf32>
    %37 = tpu.reciprocal %36 : vector<2x1xf32> -> vector<2x1xf32>
    %38 = vector.broadcast %37 : vector<2x1xf32> to vector<2x32xf32>
    %39 = arith.mulf %34, %38 : vector<2x32xf32>
    %40 = tpu.concatenate %28, %39 in 1 : vector<2x32xf32>, vector<2x32xf32> -> vector<2x64xf32>
    %cst_15 = arith.constant 1.000000e+00 : f32
    %41 = vector.broadcast %cst_15 : f32 to vector<2x64xf32>
    %42 = arith.addf %41, %40 : vector<2x64xf32>
    %43 = arith.mulf %2, %42 : vector<2x64xf32>
    %44 = tpu.concatenate %43, %40 in 1 : vector<2x64xf32>, vector<2x64xf32> -> vector<2x128xf32>
    %c0_16 = arith.constant 0 : index
    %c0_17 = arith.constant 0 : index
    %45 = vector.load %arg5[%c0_16, %c0_17] : memref<2x128xf32, #tpu.memory_space<vmem>>, vector<2x128xf32>
    tpu.vector_store %arg5[%c0_16, %c0_17], %44 {strides = array<i32>} : memref<2x128xf32, #tpu.memory_space<vmem>>, vector<2x128xf32>,
    return
  }
  func.func @transform_0(%arg0: i32) -> (i32, i32) {
    %c0_i32 = arith.constant 0 : i32
    %c0_i32_0 = arith.constant 0 : i32
    return %arg0, %c0_i32 : i32, i32
  }
  func.func @transform_1(%arg0: i32) -> (i32, i32) {
    %c0_i32 = arith.constant 0 : i32
    %c0_i32_0 = arith.constant 0 : i32
    return %arg0, %c0_i32 : i32, i32
  }
  func.func @transform_2(%arg0: i32) -> (i32, i32) {
    %c0_i32 = arith.constant 0 : i32
    %c0_i32_0 = arith.constant 0 : i32
    %c0_i32_1 = arith.constant 0 : i32
    return %c0_i32, %c0_i32_0 : i32, i32
  }
  func.func @transform_3(%arg0: i32) -> (i32, i32) {
    %c0_i32 = arith.constant 0 : i32
    %c0_i32_0 = arith.constant 0 : i32
    %c0_i32_1 = arith.constant 0 : i32
    return %c0_i32, %c0_i32_0 : i32, i32
  }
  func.func @transform_4(%arg0: i32) -> (i32, i32) {
    %c0_i32 = arith.constant 0 : i32
    %c0_i32_0 = arith.constant 0 : i32
    return %arg0, %c0_i32 : i32, i32
  }
}

</mosaic_0001>

<llo_original>
// kernel: tpu_custom_call.1
$region0: #{tpu_custom_call.1}
  #allocation0 [shape = 'u32[]', space=smem, size = 0x4, offset = 0x4, fixed_abs, tag = 'smem constant byte address 0x4 - core index']
  #allocation1 [shape = 'u32[72,128]{1,0:T(1,128)}', space=vmem, size = 0x9000, scoped, tag = 'internal scratch']
  %s0 = inlined_call_operand.vmem [shape: f32[2,32], index: 0, kind: input, shape index: {}]
  %s1 = inlined_call_operand.vmem [shape: f32[2,32], index: 1, kind: input, shape index: {}]
  %s2 = inlined_call_operand.vmem [shape: f32[64,1088], index: 2, kind: input, shape index: {}]
  %s3 = inlined_call_operand.vmem [shape: f32[577,64], index: 3, kind: input, shape index: {}]
  %s4 = inlined_call_operand.hbm [shape: f32[2,128], index: 4, kind: output, shape index: {}]
  %s5 = sld [smem:[#allocation0]]
  $region26: #{tpu_custom_call.1} parent=0
    _
  %s7 = ssub.s32 1, %s5
  %s8 = scalar_select 0, %s7, %s5
  $region1: #{tpu_custom_call.1} parent=0
    #allocation2 [shape = 'u8[1024]{0}', space=vmem, size = 0x400, scoped, tag = 'output window, operand 0, single buffered']
    #allocation3 [shape = 's32[1]{0}', space=sflag, size = 0x4, scoped, tag = 'scoped memory for tpu_custom_call.1']
    %9 = vsyncpa [#allocation3], 0
    // Predicated region
    $region2: #{tpu_custom_call.1} parent=1 // pred_check
      _
    $region3: #{tpu_custom_call.1} parent=1 // pred_check_branch
      %11 = sbr.rel (0) target = $region5
    $region4: #{tpu_custom_call.1} parent=1 // pred_region
      _
    $region5: #{tpu_custom_call.1} parent=1 // pred_fallthru
      _
    // Predicated region
    $region6: #{tpu_custom_call.1} parent=1 // pred_check
      _
    $region7: #{tpu_custom_call.1} parent=1 // pred_check_branch
      %13 = sbr.rel (0) target = $region9
    $region8: #{tpu_custom_call.1} parent=1 // pred_region
      _
    $region9: #{tpu_custom_call.1} parent=1 // pred_fallthru
      _
    // Predicated region
    $region10: #{tpu_custom_call.1} parent=1 // pred_check
      _
    $region11: #{tpu_custom_call.1} parent=1 // pred_check_branch
      %15 = sbr.rel (0) target = $region13
    $region12: #{tpu_custom_call.1} parent=1 // pred_region
      _
    $region13: #{tpu_custom_call.1} parent=1 // pred_fallthru
      _
    // Predicated region
    $region14: #{tpu_custom_call.1} parent=1 // pred_check
      _
    $region15: #{tpu_custom_call.1} parent=1 // pred_check_branch
      %17 = sbr.rel (0) target = $region17
    $region16: #{tpu_custom_call.1} parent=1 // pred_region
      _
    $region17: #{tpu_custom_call.1} parent=1 // pred_fallthru
      _
    %v18 = vld [vmem:[%s0] sm:$0x3]
    %v19 = vld [vmem:[%s1] sm:$0x3]
    %21 = vrot.lane.b32.xlu0 %v19, 32
    %v22 = vpop.permute.xlu0 %21
    %vm24 = vcmask 261120
    %v25 = vsel %vm24, %v18, %v22
    %v26 = vld [vmem:[%s2] sm:$0xff]
    %v27 = vld [vmem:[%s2 + $0x8] sm:$0xff]
    %v28 = vld [vmem:[%s2 + $0x10] sm:$0xff]
    %v29 = vld [vmem:[%s2 + $0x18] sm:$0xff]
    %v30 = vld [vmem:[%s2 + $0x20] sm:$0xff]
    %v31 = vld [vmem:[%s2 + $0x28] sm:$0xff]
    %v32 = vld [vmem:[%s2 + $0x30] sm:$0xff]
    %v33 = vld [vmem:[%s2 + $0x38] sm:$0xff]
    %v34 = vld [vmem:[%s2 + $0x40] sm:$0xff]
    %v35 = vld [vmem:[%s2 + $0x48] sm:$0xff]
    %v36 = vld [vmem:[%s2 + $0x50] sm:$0xff]
    %v37 = vld [vmem:[%s2 + $0x58] sm:$0xff]
    %v38 = vld [vmem:[%s2 + $0x60] sm:$0xff]
    %v39 = vld [vmem:[%s2 + $0x68] sm:$0xff]
    %v40 = vld [vmem:[%s2 + $0x70] sm:$0xff]
    %v41 = vld [vmem:[%s2 + $0x78] sm:$0xff]
    %v42 = vld [vmem:[%s2 + $0x80] sm:$0xff]
    %v43 = vld [vmem:[%s2 + $0x88] sm:$0xff]
    %v44 = vld [vmem:[%s2 + $0x90] sm:$0xff]
    %v45 = vld [vmem:[%s2 + $0x98] sm:$0xff]
    %v46 = vld [vmem:[%s2 + $0xa0] sm:$0xff]
    %v47 = vld [vmem:[%s2 + $0xa8] sm:$0xff]
    %v48 = vld [vmem:[%s2 + $0xb0] sm:$0xff]
    %v49 = vld [vmem:[%s2 + $0xb8] sm:$0xff]
    %v50 = vld [vmem:[%s2 + $0xc0] sm:$0xff]
    %v51 = vld [vmem:[%s2 + $0xc8] sm:$0xff]
    %v52 = vld [vmem:[%s2 + $0xd0] sm:$0xff]
    %v53 = vld [vmem:[%s2 + $0xd8] sm:$0xff]
    %v54 = vld [vmem:[%s2 + $0xe0] sm:$0xff]
    %v55 = vld [vmem:[%s2 + $0xe8] sm:$0xff]
    %v56 = vld [vmem:[%s2 + $0xf0] sm:$0xff]
    %v57 = vld [vmem:[%s2 + $0xf8] sm:$0xff]
    %v58 = vld [vmem:[%s2 + $0x100] sm:$0xff]
    %v59 = vld [vmem:[%s2 + $0x108] sm:$0xff]
    %v60 = vld [vmem:[%s2 + $0x110] sm:$0xff]
    %v61 = vld [vmem:[%s2 + $0x118] sm:$0xff]
    %v62 = vld [vmem:[%s2 + $0x120] sm:$0xff]
    %v63 = vld [vmem:[%s2 + $0x128] sm:$0xff]
    %v64 = vld [vmem:[%s2 + $0x130] sm:$0xff]
    %v65 = vld [vmem:[%s2 + $0x138] sm:$0xff]
    %v66 = vld [vmem:[%s2 + $0x140] sm:$0xff]
    %v67 = vld [vmem:[%s2 + $0x148] sm:$0xff]
    %v68 = vld [vmem:[%s2 + $0x150] sm:$0xff]
    %v69 = vld [vmem:[%s2 + $0x158] sm:$0xff]
    %v70 = vld [vmem:[%s2 + $0x160] sm:$0xff]
    %v71 = vld [vmem:[%s2 + $0x168] sm:$0xff]
    %v72 = vld [vmem:[%s2 + $0x170] sm:$0xff]
    %v73 = vld [vmem:[%s2 + $0x178] sm:$0xff]
    %v74 = vld [vmem:[%s2 + $0x180] sm:$0xff]
    %v75 = vld [vmem:[%s2 + $0x188] sm:$0xff]
    %v76 = vld [vmem:[%s2 + $0x190] sm:$0xff]
    %v77 = vld [vmem:[%s2 + $0x198] sm:$0xff]
    %v78 = vld [vmem:[%s2 + $0x1a0] sm:$0xff]
    %v79 = vld [vmem:[%s2 + $0x1a8] sm:$0xff]
    %v80 = vld [vmem:[%s2 + $0x1b0] sm:$0xff]
    %v81 = vld [vmem:[%s2 + $0x1b8] sm:$0xff]
    %v82 = vld [vmem:[%s2 + $0x1c0] sm:$0xff]
    %v83 = vld [vmem:[%s2 + $0x1c8] sm:$0xff]
    %v84 = vld [vmem:[%s2 + $0x1d0] sm:$0xff]
    %v85 = vld [vmem:[%s2 + $0x1d8] sm:$0xff]
    %v86 = vld [vmem:[%s2 + $0x1e0] sm:$0xff]
    %v87 = vld [vmem:[%s2 + $0x1e8] sm:$0xff]
    %v88 = vld [vmem:[%s2 + $0x1f0] sm:$0xff]
    %v89 = vld [vmem:[%s2 + $0x1f8] sm:$0xff]
    %v90 = vld [vmem:[%s2 + $0x200] sm:$0xff]
    %v91 = vld [vmem:[%s2 + $0x208] sm:$0xff]
    %v92 = vld [vmem:[%s2 + $0x210] sm:$0xff]
    %v93 = vld [vmem:[%s2 + $0x218] sm:$0xff]
    %v94 = vld [vmem:[%s2 + $0x220] sm:$0xff]
    %v95 = vld [vmem:[%s2 + $0x228] sm:$0xff]
    %v96 = vld [vmem:[%s2 + $0x230] sm:$0xff]
    %v97 = vld [vmem:[%s2 + $0x238] sm:$0xff]
    %vm98 = vcmask 523264
    %v100 = vsel %vm98, %v25, 0
    %102 = vmatpush.msra.mxu0 0.0
    %103 = vmatpush.msra.mxu0 0.0
    %104 = vmatpush.msra.mxu0 0.0
    %105 = vmatpush.msra.mxu0 0.0
    %106 = vmatpush.msra.mxu0 0.0
    %107 = vmatpush.msra.mxu0 0.0
    %108 = vmatpush.msra.mxu0 0.0
    %109 = vmatpush.msra.mxu0 0.0
    %110 = vmatpush.msra.mxu0 %v89
    %111 = vmatpush.msra.mxu0 %v80
    %112 = vmatpush.msra.mxu0 %v71
    %113 = vmatpush.msra.mxu0 %v62
    %114 = vmatpush.msra.mxu0 %v53
    %115 = vmatpush.msra.mxu0 %v44
    %116 = vmatpush.msra.mxu0 %v35
    %117 = vmatpush.msra.mxu0 %v26
    %118 = vmatmul.f32.gmra.mxu0 %v100
    %v119 = vpop.f32.mrf.mxu0
    %v120 = vadd.f32 0.0, %v119
    %121 = vdwg.mxu0
    %122 = vmatpush.msra.mxu0 0.0
    %123 = vmatpush.msra.mxu0 0.0
    %124 = vmatpush.msra.mxu0 0.0
    %125 = vmatpush.msra.mxu0 0.0
    %126 = vmatpush.msra.mxu0 0.0
    %127 = vmatpush.msra.mxu0 0.0
    %128 = vmatpush.msra.mxu0 0.0
    %129 = vmatpush.msra.mxu0 0.0
    %130 = vmatpush.msra.mxu0 %v90
    %131 = vmatpush.msra.mxu0 %v81
    %132 = vmatpush.msra.mxu0 %v72
    %133 = vmatpush.msra.mxu0 %v63
    %134 = vmatpush.msra.mxu0 %v54
    %135 = vmatpush.msra.mxu0 %v45
    %136 = vmatpush.msra.mxu0 %v36
    %137 = vmatpush.msra.mxu0 %v27
    %138 = vmatmul.f32.gmra.mxu0 %v100
    %v139 = vpop.f32.mrf.mxu0
    %v140 = vadd.f32 0.0, %v139
    %141 = vdwg.mxu0
    %142 = vmatpush.msra.mxu0 0.0
    %143 = vmatpush.msra.mxu0 0.0
    %144 = vmatpush.msra.mxu0 0.0
    %145 = vmatpush.msra.mxu0 0.0
    %146 = vmatpush.msra.mxu0 0.0
    %147 = vmatpush.msra.mxu0 0.0
    %148 = vmatpush.msra.mxu0 0.0
    %149 = vmatpush.msra.mxu0 0.0
    %150 = vmatpush.msra.mxu0 %v91
    %151 = vmatpush.msra.mxu0 %v82
    %152 = vmatpush.msra.mxu0 %v73
    %153 = vmatpush.msra.mxu0 %v64
    %154 = vmatpush.msra.mxu0 %v55
    %155 = vmatpush.msra.mxu0 %v46
    %156 = vmatpush.msra.mxu0 %v37
    %157 = vmatpush.msra.mxu0 %v28
    %158 = vmatmul.f32.gmra.mxu0 %v100
    %v159 = vpop.f32.mrf.mxu0
    %v160 = vadd.f32 0.0, %v159
    %161 = vdwg.mxu0
    %162 = vmatpush.msra.mxu0 0.0
    %163 = vmatpush.msra.mxu0 0.0
    %164 = vmatpush.msra.mxu0 0.0
    %165 = vmatpush.msra.mxu0 0.0
    %166 = vmatpush.msra.mxu0 0.0
    %167 = vmatpush.msra.mxu0 0.0
    %168 = vmatpush.msra.mxu0 0.0
    %169 = vmatpush.msra.mxu0 0.0
    %170 = vmatpush.msra.mxu0 %v92
    %171 = vmatpush.msra.mxu0 %v83
    %172 = vmatpush.msra.mxu0 %v74
    %173 = vmatpush.msra.mxu0 %v65
    %174 = vmatpush.msra.mxu0 %v56
    %175 = vmatpush.msra.mxu0 %v47
    %176 = vmatpush.msra.mxu0 %v38
    %177 = vmatpush.msra.mxu0 %v29
    %178 = vmatmul.f32.gmra.mxu0 %v100
    %v179 = vpop.f32.mrf.mxu0
    %v180 = vadd.f32 0.0, %v179
    %181 = vdwg.mxu0
    %182 = vmatpush.msra.mxu0 0.0
    %183 = vmatpush.msra.mxu0 0.0
    %184 = vmatpush.msra.mxu0 0.0
    %185 = vmatpush.msra.mxu0 0.0
    %186 = vmatpush.msra.mxu0 0.0
    %187 = vmatpush.msra.mxu0 0.0
    %188 = vmatpush.msra.mxu0 0.0
    %189 = vmatpush.msra.mxu0 0.0
    %190 = vmatpush.msra.mxu0 %v93
    %191 = vmatpush.msra.mxu0 %v84
    %192 = vmatpush.msra.mxu0 %v75
    %193 = vmatpush.msra.mxu0 %v66
    %194 = vmatpush.msra.mxu0 %v57
    %195 = vmatpush.msra.mxu0 %v48
    %196 = vmatpush.msra.mxu0 %v39
    %197 = vmatpush.msra.mxu0 %v30
    %198 = vmatmul.f32.gmra.mxu0 %v100
    %v199 = vpop.f32.mrf.mxu0
    %v200 = vadd.f32 0.0, %v199
    %201 = vdwg.mxu0
    %202 = vmatpush.msra.mxu0 0.0
    %203 = vmatpush.msra.mxu0 0.0
    %204 = vmatpush.msra.mxu0 0.0
    %205 = vmatpush.msra.mxu0 0.0
    %206 = vmatpush.msra.mxu0 0.0
    %207 = vmatpush.msra.mxu0 0.0
    %208 = vmatpush.msra.mxu0 0.0
    %209 = vmatpush.msra.mxu0 0.0
    %210 = vmatpush.msra.mxu0 %v94
    %211 = vmatpush.msra.mxu0 %v85
    %212 = vmatpush.msra.mxu0 %v76
    %213 = vmatpush.msra.mxu0 %v67
    %214 = vmatpush.msra.mxu0 %v58
    %215 = vmatpush.msra.mxu0 %v49
    %216 = vmatpush.msra.mxu0 %v40
    %217 = vmatpush.msra.mxu0 %v31
    %218 = vmatmul.f32.gmra.mxu0 %v100
    %v219 = vpop.f32.mrf.mxu0
    %v220 = vadd.f32 0.0, %v219
    %221 = vdwg.mxu0
    %222 = vmatpush.msra.mxu0 0.0
    %223 = vmatpush.msra.mxu0 0.0
    %224 = vmatpush.msra.mxu0 0.0
    %225 = vmatpush.msra.mxu0 0.0
    %226 = vmatpush.msra.mxu0 0.0
    %227 = vmatpush.msra.mxu0 0.0
    %228 = vmatpush.msra.mxu0 0.0
    %229 = vmatpush.msra.mxu0 0.0
    %230 = vmatpush.msra.mxu0 %v95
    %231 = vmatpush.msra.mxu0 %v86
    %232 = vmatpush.msra.mxu0 %v77
    %233 = vmatpush.msra.mxu0 %v68
    %234 = vmatpush.msra.mxu0 %v59
    %235 = vmatpush.msra.mxu0 %v50
    %236 = vmatpush.msra.mxu0 %v41
    %237 = vmatpush.msra.mxu0 %v32
    %238 = vmatmul.f32.gmra.mxu0 %v100
    %v239 = vpop.f32.mrf.mxu0
    %v240 = vadd.f32 0.0, %v239
    %241 = vdwg.mxu0
    %242 = vmatpush.msra.mxu0 0.0
    %243 = vmatpush.msra.mxu0 0.0
    %244 = vmatpush.msra.mxu0 0.0
    %245 = vmatpush.msra.mxu0 0.0
    %246 = vmatpush.msra.mxu0 0.0
    %247 = vmatpush.msra.mxu0 0.0
    %248 = vmatpush.msra.mxu0 0.0
    %249 = vmatpush.msra.mxu0 0.0
    %250 = vmatpush.msra.mxu0 %v96
    %251 = vmatpush.msra.mxu0 %v87
    %252 = vmatpush.msra.mxu0 %v78
    %253 = vmatpush.msra.mxu0 %v69
    %254 = vmatpush.msra.mxu0 %v60
    %255 = vmatpush.msra.mxu0 %v51
    %256 = vmatpush.msra.mxu0 %v42
    %257 = vmatpush.msra.mxu0 %v33
    %258 = vmatmul.f32.gmra.mxu0 %v100
    %v259 = vpop.f32.mrf.mxu0
    %v260 = vadd.f32 0.0, %v259
    %261 = vdwg.mxu0
    %262 = vmatpush.msra.mxu0 0.0
    %263 = vmatpush.msra.mxu0 0.0
    %264 = vmatpush.msra.mxu0 0.0
    %265 = vmatpush.msra.mxu0 0.0
    %266 = vmatpush.msra.mxu0 0.0
    %267 = vmatpush.msra.mxu0 0.0
    %268 = vmatpush.msra.mxu0 0.0
    %269 = vmatpush.msra.mxu0 0.0
    %270 = vmatpush.msra.mxu0 %v97
    %271 = vmatpush.msra.mxu0 %v88
    %272 = vmatpush.msra.mxu0 %v79
    %273 = vmatpush.msra.mxu0 %v70
    %274 = vmatpush.msra.mxu0 %v61
    %275 = vmatpush.msra.mxu0 %v52
    %276 = vmatpush.msra.mxu0 %v43
    %277 = vmatpush.msra.mxu0 %v34
    %278 = vmatmul.f32.gmra.mxu0 %v100
    %v279 = vpop.f32.mrf.mxu0
    %v280 = vadd.f32 0.0, %v279
    %281 = vdwg.mxu0
    %v282 = vld [vmem:[%s3 + $0x240] sm:$0x1]
    %v283 = vperm.slane %v282, 0
    %v284 = vadd.f32 %v280, %v283
    %v285 = vmul.f32 %v120, %v200
    %v286 = vmul.f32 %v140, %v220
    %v287 = vmul.f32 %v160, %v240
    %v288 = vmul.f32 %v180, %v260
    %v289 = vld [vmem:[%s3] sm:$0xff]
    %v290 = vld [vmem:[%s3 + $0x8] sm:$0xff]
    %v291 = vld [vmem:[%s3 + $0x10] sm:$0xff]
    %v292 = vld [vmem:[%s3 + $0x18] sm:$0xff]
    %v293 = vld [vmem:[%s3 + $0x20] sm:$0xff]
    %v294 = vld [vmem:[%s3 + $0x28] sm:$0xff]
    %v295 = vld [vmem:[%s3 + $0x30] sm:$0xff]
    %v296 = vld [vmem:[%s3 + $0x38] sm:$0xff]
    %v297 = vld [vmem:[%s3 + $0x40] sm:$0xff]
    %v298 = vld [vmem:[%s3 + $0x48] sm:$0xff]
    %v299 = vld [vmem:[%s3 + $0x50] sm:$0xff]
    %v300 = vld [vmem:[%s3 + $0x58] sm:$0xff]
    %v301 = vld [vmem:[%s3 + $0x60] sm:$0xff]
    %v302 = vld [vmem:[%s3 + $0x68] sm:$0xff]
    %v303 = vld [vmem:[%s3 + $0x70] sm:$0xff]
    %v304 = vld [vmem:[%s3 + $0x78] sm:$0xff]
    %v305 = vld [vmem:[%s3 + $0x80] sm:$0xff]
    %v306 = vld [vmem:[%s3 + $0x88] sm:$0xff]
    %v307 = vld [vmem:[%s3 + $0x90] sm:$0xff]
    %v308 = vld [vmem:[%s3 + $0x98] sm:$0xff]
    %v309 = vld [vmem:[%s3 + $0xa0] sm:$0xff]
    %v310 = vld [vmem:[%s3 + $0xa8] sm:$0xff]
    %v311 = vld [vmem:[%s3 + $0xb0] sm:$0xff]
    %v312 = vld [vmem:[%s3 + $0xb8] sm:$0xff]
    %v313 = vld [vmem:[%s3 + $0xc0] sm:$0xff]
    %v314 = vld [vmem:[%s3 + $0xc8] sm:$0xff]
    %v315 = vld [vmem:[%s3 + $0xd0] sm:$0xff]
    %v316 = vld [vmem:[%s3 + $0xd8] sm:$0xff]
    %v317 = vld [vmem:[%s3 + $0xe0] sm:$0xff]
    %v318 = vld [vmem:[%s3 + $0xe8] sm:$0xff]
    %v319 = vld [vmem:[%s3 + $0xf0] sm:$0xff]
    %v320 = vld [vmem:[%s3 + $0xf8] sm:$0xff]
    %v321 = vld [vmem:[%s3 + $0x100] sm:$0xff]
    %v322 = vld [vmem:[%s3 + $0x108] sm:$0xff]
    %v323 = vld [vmem:[%s3 + $0x110] sm:$0xff]
    %v324 = vld [vmem:[%s3 + $0x118] sm:$0xff]
    %v325 = vld [vmem:[%s3 + $0x120] sm:$0xff]
    %v326 = vld [vmem:[%s3 + $0x128] sm:$0xff]
    %v327 = vld [vmem:[%s3 + $0x130] sm:$0xff]
    %v328 = vld [vmem:[%s3 + $0x138] sm:$0xff]
    %v329 = vld [vmem:[%s3 + $0x140] sm:$0xff]
    %v330 = vld [vmem:[%s3 + $0x148] sm:$0xff]
    %v331 = vld [vmem:[%s3 + $0x150] sm:$0xff]
    %v332 = vld [vmem:[%s3 + $0x158] sm:$0xff]
    %v333 = vld [vmem:[%s3 + $0x160] sm:$0xff]
    %v334 = vld [vmem:[%s3 + $0x168] sm:$0xff]
    %v335 = vld [vmem:[%s3 + $0x170] sm:$0xff]
    %v336 = vld [vmem:[%s3 + $0x178] sm:$0xff]
    %v337 = vld [vmem:[%s3 + $0x180] sm:$0xff]
    %v338 = vld [vmem:[%s3 + $0x188] sm:$0xff]
    %v339 = vld [vmem:[%s3 + $0x190] sm:$0xff]
    %v340 = vld [vmem:[%s3 + $0x198] sm:$0xff]
    %v341 = vld [vmem:[%s3 + $0x1a0] sm:$0xff]
    %v342 = vld [vmem:[%s3 + $0x1a8] sm:$0xff]
    %v343 = vld [vmem:[%s3 + $0x1b0] sm:$0xff]
    %v344 = vld [vmem:[%s3 + $0x1b8] sm:$0xff]
    %v345 = vld [vmem:[%s3 + $0x1c0] sm:$0xff]
    %v346 = vld [vmem:[%s3 + $0x1c8] sm:$0xff]
    %v347 = vld [vmem:[%s3 + $0x1d0] sm:$0xff]
    %v348 = vld [vmem:[%s3 + $0x1d8] sm:$0xff]
    %v349 = vld [vmem:[%s3 + $0x1e0] sm:$0xff]
    %v350 = vld [vmem:[%s3 + $0x1e8] sm:$0xff]
    %v351 = vld [vmem:[%s3 + $0x1f0] sm:$0xff]
    %v352 = vld [vmem:[%s3 + $0x1f8] sm:$0xff]
    %353 = vmatpush.msra.mxu0 %v304
    %354 = vmatpush.msra.mxu0 %v303
    %355 = vmatpush.msra.mxu0 %v302
    %356 = vmatpush.msra.mxu0 %v301
    %357 = vmatpush.msra.mxu0 %v300
    %358 = vmatpush.msra.mxu0 %v299
    %359 = vmatpush.msra.mxu0 %v298
    %360 = vmatpush.msra.mxu0 %v297
    %361 = vmatpush.msra.mxu0 %v296
    %362 = vmatpush.msra.mxu0 %v295
    %363 = vmatpush.msra.mxu0 %v294
    %364 = vmatpush.msra.mxu0 %v293
    %365 = vmatpush.msra.mxu0 %v292
    %366 = vmatpush.msra.mxu0 %v291
    %367 = vmatpush.msra.mxu0 %v290
    %368 = vmatpush.msra.mxu0 %v289
    %369 = vmatmul.f32.gmra.mxu0 %v285
    %v370 = vpop.f32.mrf.mxu0
    %v371 = vadd.f32 0.0, %v370
    %372 = vdwg.mxu0
    %373 = vmatpush.msra.mxu0 %v320
    %374 = vmatpush.msra.mxu0 %v319
    %375 = vmatpush.msra.mxu0 %v318
    %376 = vmatpush.msra.mxu0 %v317
    %377 = vmatpush.msra.mxu0 %v316
    %378 = vmatpush.msra.mxu0 %v315
    %379 = vmatpush.msra.mxu0 %v314
    %380 = vmatpush.msra.mxu0 %v313
    %381 = vmatpush.msra.mxu0 %v312
    %382 = vmatpush.msra.mxu0 %v311
    %383 = vmatpush.msra.mxu0 %v310
    %384 = vmatpush.msra.mxu0 %v309
    %385 = vmatpush.msra.mxu0 %v308
    %386 = vmatpush.msra.mxu0 %v307
    %387 = vmatpush.msra.mxu0 %v306
    %388 = vmatpush.msra.mxu0 %v305
    %389 = vmatmul.f32.gmra.mxu0 %v286
    %v390 = vpop.f32.mrf.mxu0
    %v391 = vadd.f32 %v371, %v390
    %392 = vdwg.mxu0
    %393 = vmatpush.msra.mxu0 %v336
    %394 = vmatpush.msra.mxu0 %v335
    %395 = vmatpush.msra.mxu0 %v334
    %396 = vmatpush.msra.mxu0 %v333
    %397 = vmatpush.msra.mxu0 %v332
    %398 = vmatpush.msra.mxu0 %v331
    %399 = vmatpush.msra.mxu0 %v330
    %400 = vmatpush.msra.mxu0 %v329
    %401 = vmatpush.msra.mxu0 %v328
    %402 = vmatpush.msra.mxu0 %v327
    %403 = vmatpush.msra.mxu0 %v326
    %404 = vmatpush.msra.mxu0 %v325
    %405 = vmatpush.msra.mxu0 %v324
    %406 = vmatpush.msra.mxu0 %v323
    %407 = vmatpush.msra.mxu0 %v322
    %408 = vmatpush.msra.mxu0 %v321
    %409 = vmatmul.f32.gmra.mxu0 %v287
    %v410 = vpop.f32.mrf.mxu0
    %v411 = vadd.f32 %v391, %v410
    %412 = vdwg.mxu0
    %413 = vmatpush.msra.mxu0 %v352
    %414 = vmatpush.msra.mxu0 %v351
    %415 = vmatpush.msra.mxu0 %v350
    %416 = vmatpush.msra.mxu0 %v349
    %417 = vmatpush.msra.mxu0 %v348
    %418 = vmatpush.msra.mxu0 %v347
    %419 = vmatpush.msra.mxu0 %v346
    %420 = vmatpush.msra.mxu0 %v345
    %421 = vmatpush.msra.mxu0 %v344
    %422 = vmatpush.msra.mxu0 %v343
    %423 = vmatpush.msra.mxu0 %v342
    %424 = vmatpush.msra.mxu0 %v341
    %425 = vmatpush.msra.mxu0 %v340
    %426 = vmatpush.msra.mxu0 %v339
    %427 = vmatpush.msra.mxu0 %v338
    %428 = vmatpush.msra.mxu0 %v337
    %429 = vmatmul.f32.gmra.mxu0 %v288
    %v430 = vpop.f32.mrf.mxu0
    %v431 = vadd.f32 %v411, %v430
    %432 = vdwg.mxu0
    %v433 = vtanh.pop %v431
    %v434 = vld [vmem:[%s3 + $0x200] sm:$0xff]
    %v435 = vld [vmem:[%s3 + $0x208] sm:$0xff]
    %v436 = vld [vmem:[%s3 + $0x210] sm:$0xff]
    %v437 = vld [vmem:[%s3 + $0x218] sm:$0xff]
    %v438 = vld [vmem:[%s3 + $0x220] sm:$0xff]
    %v439 = vld [vmem:[%s3 + $0x228] sm:$0xff]
    %v440 = vld [vmem:[%s3 + $0x230] sm:$0xff]
    %v441 = vld [vmem:[%s3 + $0x238] sm:$0xff]
    %v443 = vsel %vm98, %v433, 0
    %445 = vmatpush.msra.mxu0 0.0
    %446 = vmatpush.msra.mxu0 0.0
    %447 = vmatpush.msra.mxu0 0.0
    %448 = vmatpush.msra.mxu0 0.0
    %449 = vmatpush.msra.mxu0 0.0
    %450 = vmatpush.msra.mxu0 0.0
    %451 = vmatpush.msra.mxu0 0.0
    %452 = vmatpush.msra.mxu0 0.0
    %453 = vmatpush.msra.mxu0 %v441
    %454 = vmatpush.msra.mxu0 %v440
    %455 = vmatpush.msra.mxu0 %v439
    %456 = vmatpush.msra.mxu0 %v438
    %457 = vmatpush.msra.mxu0 %v437
    %458 = vmatpush.msra.mxu0 %v436
    %459 = vmatpush.msra.mxu0 %v435
    %460 = vmatpush.msra.mxu0 %v434
    %461 = vmatmul.f32.gmra.mxu0 %v443
    %v462 = vpop.f32.mrf.mxu0
    %v463 = vadd.f32 0.0, %v462
    %464 = vdwg.mxu0
    %v465 = vmul.f32 %v463, %v284
    %vm466 = vcmask 254976
    %v467 = vsel %vm466, %v465, -inf
    %468 = vmax.xlane.f32.xlu0 %v467
    %v469 = vpop.xlane.xlu0 %468
    %v470 = vsub.f32 %v465, %v469
    %v471 = vmul.f32 %v470, 1.442695
    %v472 = vpow.pop %v471
    %v473 = vsel %vm466, %v472, 0.0
    %474 = vadd.xlane.f32.xlu0 %v473
    %v475 = vpop.xlane.xlu0 %474
    %v476 = vrcp.pop %v475
    %v477 = vmul.f32 %v475, %v476
    %v478 = vsub.f32 1.0, %v477
    %v479 = vmul.f32 %v476, %v478
    %v480 = vadd.f32 %v476, %v479
    %vm481 = vweird.f32 %v475
    %vm482 = vweird.f32 %v476
    %vm483 = vmor %vm481, %vm482
    %v484 = vsel %vm483, %v476, %v480
    %v485 = vand.u32 2147483647, %v475
    %vm486 = vcmp.eq.f32.partialorder %v485, 8.507059e+37
    %v487 = vand.u32 %v475, 2147483648
    %v488 = vor.u32 1.1754944e-38, %v487
    %v489 = vsel %vm486, %v488, %v484
    %v490 = vmul.f32 %v472, %v489
    %vm491 = vcmask 517376
    %v492 = vsel %vm491, %v465, -inf
    %493 = vmax.xlane.f32.xlu0 %v492
    %v494 = vpop.xlane.xlu0 %493
    %v495 = vsub.f32 %v465, %v494
    %v496 = vmul.f32 %v495, 1.442695
    %v497 = vpow.pop %v496
    %499 = vrot.lane.b32.xlu0 %v497, 96
    %v500 = vpop.permute.xlu0 %499
    %v502 = vsel %vm466, %v500, 0.0
    %503 = vadd.xlane.f32.xlu0 %v502
    %v504 = vpop.xlane.xlu0 %503
    %v505 = vrcp.pop %v504
    %v506 = vmul.f32 %v504, %v505
    %v507 = vsub.f32 1.0, %v506
    %v508 = vmul.f32 %v505, %v507
    %v509 = vadd.f32 %v505, %v508
    %vm510 = vweird.f32 %v504
    %vm511 = vweird.f32 %v505
    %vm512 = vmor %vm510, %vm511
    %v513 = vsel %vm512, %v505, %v509
    %v514 = vand.u32 2147483647, %v504
    %vm515 = vcmp.eq.f32.partialorder %v514, 8.507059e+37
    %v516 = vand.u32 %v504, 2147483648
    %v517 = vor.u32 1.1754944e-38, %v516
    %v518 = vsel %vm515, %v517, %v513
    %v519 = vmul.f32 %v497, %v518
    %v520 = vsel %vm24, %v490, %v519
    %v521 = vadd.f32 %v520, 1.0
    %v522 = vmul.f32 %v25, %v521
    %524 = vrot.lane.b32.xlu0 %v520, 64
    %v525 = vpop.permute.xlu0 %524
    %v527 = vsel %vm98, %v522, %v525
    %528 = vst [vmem:[#allocation2] sm:$0x3] %v527
    // Predicated region
    $region18: #{tpu_custom_call.1} parent=1 // pred_check
      _
    $region19: #{tpu_custom_call.1} parent=1 // pred_check_branch
      %530 = sbr.rel (0) target = $region21
    $region20: #{tpu_custom_call.1} parent=1 // pred_region
      %532 = vsyncadd [#allocation3], 0
      %s534 = sshll.u32 [#allocation2], 4
      %s535 = int_to_ptr.vmem [resolvable:$true] %s534
      %s536 = sshll.u32 %s4, 4
      %s537 = int_to_ptr.hbm [resolvable:$true] %s536
      %539 = dma.vmem_to_hbm [thread:$0]  %s535, 32, %s537, [#allocation3]
    $region21: #{tpu_custom_call.1} parent=1 // pred_fallthru
      _
    // Predicated region
    $region22: #{tpu_custom_call.1} parent=1 // pred_check
      _
    $region23: #{tpu_custom_call.1} parent=1 // pred_check_branch
      %541 = sbr.rel (0) target = $region25
    $region24: #{tpu_custom_call.1} parent=1 // pred_region
      %543 = dma.done [#allocation3], 32
    $region25: #{tpu_custom_call.1} parent=1 // pred_fallthru
      _
    %544 = vsyncpa [#allocation3], 1

</llo_original>
